<compile_context>
chip_gen: v6e
topology: v6e:2x2x1
jax: 0.10.0
libtpu: 0.0.40
codegen_flags: <defaults>
</compile_context>

<pallas_src>
import jax
import jax.numpy as jnp
from jax.experimental import pallas as pl
from jax.experimental.pallas import tpu as pltpu

LANE_W = 512                    # lane-dense last dim (multiple of 128)
TILE_R = 2048                   # rows per grid step (multiple of 8) -> 4 MiB/buffer (f32)
SMALL_N = 1 << 16               # below this, fused XLA elementwise wins on overhead
VMEM_LIMIT = 32 * 1024 * 1024   # covers 16 MiB of double-buffered tiles on all gens


def _linear_kernel(w_ref, b_ref, x_ref, o_ref):
    # w_ref, b_ref: (1, 1) f32 scalars in SMEM
    # x_ref, o_ref: (tile_r, LANE_W) tiles in VMEM
    x = x_ref[...]
    # bf16 stays bf16 on the VPU (v6e/v7x); everything else computes in f32.
    cdt = x.dtype if x.dtype == jnp.bfloat16 else jnp.float32
    w = w_ref[0, 0].astype(cdt)
    b = b_ref[0, 0].astype(cdt)
    o_ref[...] = (x.astype(cdt) * w + b).astype(o_ref.dtype)


def linear_regression_forward(x, weight, bias):
    """y = x @ weight.T + bias  with weight (1, 1), bias (1,), x (N, 1)."""
    n, f = x.shape
    assert f == 1 and weight.shape == (1, 1) and bias.shape == (1,)
    dtype = x.dtype

    # --- small-N fast path: kernel dispatch + relayout overhead dominates. ---
    if n < SMALL_N:
        return (x * weight[0, 0] + bias[0]).astype(dtype)

    # Scalars for SMEM (32-bit).
    w2d = weight.reshape(1, 1).astype(jnp.float32)
    b2d = bias.reshape(1, 1).astype(jnp.float32)

    # Lane-dense aligned prefix handled by the kernel (no jnp.pad HBM pass);
    # the < LANE_W element tail is computed with fused plain JAX below.
    n_main = (n // LANE_W) * LANE_W
    rows = n_main // LANE_W
    flat = x.reshape(-1)
    x2d = flat[:n_main].reshape(rows, LANE_W)

    # Single full-extent block for moderate N; otherwise 2048-row tiles with a
    # (possibly partial) last block handled by Pallas.
    tile_r = rows if rows <= TILE_R else TILE_R
    grid = (pl.cdiv(rows, tile_r),)

    itemsize = jnp.dtype(dtype).itemsize
    y2d = pl.pallas_call(
        _linear_kernel,
        out_shape=jax.ShapeDtypeStruct((rows, LANE_W), dtype),
        grid=grid,
        in_specs=[
            pl.BlockSpec(memory_space=pltpu.MemorySpace.SMEM),   # weight scalar
            pl.BlockSpec(memory_space=pltpu.MemorySpace.SMEM),   # bias scalar
            pl.BlockSpec((tile_r, LANE_W), lambda i: (i, 0)),    # x tile
        ],
        out_specs=pl.BlockSpec((tile_r, LANE_W), lambda i: (i, 0)),
        compiler_params=pltpu.CompilerParams(
            dimension_semantics=("parallel",),
            vmem_limit_bytes=VMEM_LIMIT,
        ),
        cost_estimate=pl.CostEstimate(
            flops=2 * n_main,                       # mul + add per element
            bytes_accessed=2 * n_main * itemsize,   # 1 read + 1 write pass
            transcendentals=0,
        ),
    )(w2d, b2d, x2d)

    y_flat = y2d.reshape(-1)
    tail = n - n_main
    if tail:
        y_tail = (flat[n_main:] * weight[0, 0] + bias[0]).astype(dtype)
        y_flat = jnp.concatenate([y_flat, y_tail])
    return y_flat.reshape(n, 1)


if __name__ == "__main__":
    key = jax.random.PRNGKey(0)
    kx, kw, kb, kx2, kx3, kx4 = jax.random.split(key, 6)

    # Deterministic parameter init (shapes from nn.Linear(1, 1)).
    weight = jax.random.uniform(kw, (1, 1), jnp.float32, -1.0, 1.0)
    bias = jax.random.uniform(kb, (1,), jnp.float32, -1.0, 1.0)

    def ref(x):
        return x @ weight.T + bias

    # 1) Tiny batch (the module's natural example shape) -> fast path.
    x1 = jax.random.normal(kx, (8, 1), jnp.float32)
    y1 = jax.block_until_ready(linear_regression_forward(x1, weight, bias))
    assert y1.shape == (8, 1)
    assert jnp.allclose(y1, ref(x1), atol=1e-6), "mismatch vs reference (N=8)"

    # 2) Medium, lane-unaligned batch -> still fast path.
    x2 = jax.random.normal(kx2, (1300, 1), jnp.float32)
    y2 = jax.block_until_ready(linear_regression_forward(x2, weight, bias))
    assert y2.shape == (1300, 1)
    assert jnp.allclose(y2, ref(x2), atol=1e-6), "mismatch vs reference (N=1300)"

    # 3) Above the kernel threshold, lane-unaligned -> Pallas kernel on the
    #    aligned prefix (single block) + fused tail.
    n3 = SMALL_N + 300
    x3 = jax.random.normal(kx3, (n3, 1), jnp.float32)
    y3 = jax.block_until_ready(linear_regression_forward(x3, weight, bias))
    assert y3.shape == (n3, 1)
    assert jnp.allclose(y3, ref(x3), atol=1e-6), "mismatch vs reference (kernel, 1 block)"

    # 4) Multi-block grid with a partial last row-block + tail.
    n4 = TILE_R * LANE_W + 5000
    x4 = jax.random.normal(kx4, (n4, 1), jnp.float32)
    y4 = jax.block_until_ready(linear_regression_forward(x4, weight, bias))
    assert y4.shape == (n4, 1)
    assert jnp.allclose(y4, ref(x4), atol=1e-6), "mismatch vs reference (kernel, multi-block)"

    print("KERNEL_OK")
</pallas_src>

<mosaic_0001>
module attributes {stable_mosaic.version = 11 : i64} {
  func.func @_linear_kernel(%arg0: i32, %arg1: memref<1x1xf32, #tpu.memory_space<smem>>, %arg2: memref<1x1xf32, #tpu.memory_space<smem>>, %arg3: memref<128x512xf32, #tpu.memory_space<vmem>>, %arg4: memref<128x512xf32, #tpu.memory_space<vmem>>) attributes {dimension_semantics = [#tpu.dimension_semantics<parallel>], iteration_bounds = array<i64: 1>, scalar_prefetch = 0 : i64, scratch_operands = 0 : i64, tpu.core_type = #tpu.core_type<tc>, window_params = [{transform_indices = @transform_0, window_bounds = array<i64: 1, 1>}, {transform_indices = @transform_1, window_bounds = array<i64: 1, 1>}, {transform_indices = @transform_2, window_bounds = array<i64: 128, 512>}, {transform_indices = @transform_3, window_bounds = array<i64: 128, 512>}]} {
    %c0 = arith.constant 0 : index
    %c0_0 = arith.constant 0 : index
    %0 = vector.load %arg3[%c0, %c0_0] : memref<128x512xf32, #tpu.memory_space<vmem>>, vector<128x512xf32>
    %c0_1 = arith.constant 0 : index
    %c0_2 = arith.constant 0 : index
    %1 = memref.load %arg1[%c0_1, %c0_2] : memref<1x1xf32, #tpu.memory_space<smem>>
    %c0_3 = arith.constant 0 : index
    %c0_4 = arith.constant 0 : index
    %2 = memref.load %arg2[%c0_3, %c0_4] : memref<1x1xf32, #tpu.memory_space<smem>>
    %3 = vector.broadcast %1 : f32 to vector<128x512xf32>
    %4 = arith.mulf %0, %3 : vector<128x512xf32>
    %5 = vector.broadcast %2 : f32 to vector<128x512xf32>
    %6 = arith.addf %4, %5 : vector<128x512xf32>
    %c0_5 = arith.constant 0 : index
    %c0_6 = arith.constant 0 : index
    %7 = vector.load %arg4[%c0_5, %c0_6] : memref<128x512xf32, #tpu.memory_space<vmem>>, vector<128x512xf32>
    tpu.vector_store %arg4[%c0_5, %c0_6], %6 {strides = array<i32>} : memref<128x512xf32, #tpu.memory_space<vmem>>, vector<128x512xf32>,
    return
  }
  func.func @transform_0(%arg0: i32) -> (i32, i32) {
    %c0_i32 = arith.constant 0 : i32
    %c0_i32_0 = arith.constant 0 : i32
    %c0_i32_1 = arith.constant 0 : i32
    return %c0_i32, %c0_i32_0 : i32, i32
  }
  func.func @transform_1(%arg0: i32) -> (i32, i32) {
    %c0_i32 = arith.constant 0 : i32
    %c0_i32_0 = arith.constant 0 : i32
    %c0_i32_1 = arith.constant 0 : i32
    return %c0_i32, %c0_i32_0 : i32, i32
  }
  func.func @transform_2(%arg0: i32) -> (i32, i32) {
    %c0_i32 = arith.constant 0 : i32
    %c0_i32_0 = arith.constant 0 : i32
    return %arg0, %c0_i32 : i32, i32
  }
  func.func @transform_3(%arg0: i32) -> (i32, i32) {
    %c0_i32 = arith.constant 0 : i32
    %c0_i32_0 = arith.constant 0 : i32
    return %arg0, %c0_i32 : i32, i32
  }
}

</mosaic_0001>

<llo_original>
// kernel: tpu_custom_call.1
$region0: #{tpu_custom_call.1}
  #allocation0 [shape = 'u32[]', space=smem, size = 0x4, offset = 0x4, fixed_abs, tag = 'smem constant byte address 0x4 - core index']
  #allocation1 [shape = 'u32[144,128]{1,0:T(1,128)}', space=vmem, size = 0x12000, scoped, tag = 'internal scratch']
  #allocation2 [shape = 'f32[1,1]{1,0:T(1,128)S(6)}', space=smem, size = 0x200, scoped, tag = 'scoped memory for tpu_custom_call.1']
  #allocation3 [shape = 'f32[1,1]{1,0:T(1,128)S(6)}', space=smem, size = 0x200, scoped, tag = 'scoped memory for tpu_custom_call.1']
  %s0 = inlined_call_operand.<no memory space> [shape: f32[1,1], index: 0, kind: input, shape index: {}]
  %s1 = inlined_call_operand.<no memory space> [shape: f32[1,1], index: 1, kind: input, shape index: {}]
  %s2 = inlined_call_operand.hbm [shape: f32[128,512], index: 2, kind: input, shape index: {}]
  %s3 = inlined_call_operand.hbm [shape: f32[128,512], index: 3, kind: output, shape index: {}]
  %s4 = sld [smem:[#allocation0]]
  $region26: #{tpu_custom_call.1} parent=0
    _
  %s6 = ssub.s32 1, %s4
  %s7 = scalar_select 0, %s6, %s4
  %8 = sst [smem:[#allocation2]] %s0
  %9 = sst [smem:[#allocation3]] %s1
  $region1: #{tpu_custom_call.1} parent=0
    #allocation4 [shape = 'u8[262144]{0}', space=vmem, size = 0x40000, scoped, tag = 'input window, operand 2, single buffered']
    #allocation5 [shape = 's32[1]{0}', space=sflag, size = 0x4, scoped, tag = 'scoped memory for tpu_custom_call.1']
    #allocation6 [shape = 's32[1]{0}', space=sflag, size = 0x4, scoped, tag = 'scoped memory for tpu_custom_call.1']
    #allocation7 [shape = 'u8[262144]{0}', space=vmem, size = 0x40000, scoped, tag = 'output window, operand 0, single buffered']
    %10 = vsyncpa [#allocation5], 0
    %11 = vsyncpa [#allocation6], 0
    // Predicated region
    $region2: #{tpu_custom_call.1} parent=1 // pred_check
      _
    $region3: #{tpu_custom_call.1} parent=1 // pred_check_branch
      %13 = sbr.rel (0) target = $region5
    $region4: #{tpu_custom_call.1} parent=1 // pred_region
      _
    $region5: #{tpu_custom_call.1} parent=1 // pred_fallthru
      _
    // Predicated region
    $region6: #{tpu_custom_call.1} parent=1 // pred_check
      _
    $region7: #{tpu_custom_call.1} parent=1 // pred_check_branch
      %15 = sbr.rel (0) target = $region9
    $region8: #{tpu_custom_call.1} parent=1 // pred_region
      _
    $region9: #{tpu_custom_call.1} parent=1 // pred_fallthru
      _
    // Predicated region
    $region10: #{tpu_custom_call.1} parent=1 // pred_check
      _
    $region11: #{tpu_custom_call.1} parent=1 // pred_check_branch
      %17 = sbr.rel (0) target = $region13
    $region12: #{tpu_custom_call.1} parent=1 // pred_region
      %s19 = ssub.s32 8192, 8192
      %20 = vsyncadd [#allocation5], %s19
      %s21 = sshll.u32 [#allocation4], 4
      %s22 = int_to_ptr.vmem [resolvable:$true] %s21
      %27 = dma.hbm_to_vmem [thread:$0]  %s2, 8192, %s22, [#allocation5], 512, 512, 32
    $region13: #{tpu_custom_call.1} parent=1 // pred_fallthru
      _
    // Predicated region
    $region14: #{tpu_custom_call.1} parent=1 // pred_check
      _
    $region15: #{tpu_custom_call.1} parent=1 // pred_check_branch
      %29 = sbr.rel (0) target = $region17
    $region16: #{tpu_custom_call.1} parent=1 // pred_region
      %30 = dma.done [#allocation5], 8192
    $region17: #{tpu_custom_call.1} parent=1 // pred_fallthru
      _
    %v31 = vld [vmem:[#allocation4] sm:$0xff]
    %v32 = vld [vmem:[#allocation4 + $0x8] sm:$0xff]
    %v33 = vld [vmem:[#allocation4 + $0x10] sm:$0xff]
    %v34 = vld [vmem:[#allocation4 + $0x18] sm:$0xff]
    %v35 = vld [vmem:[#allocation4 + $0x20] sm:$0xff]
    %v36 = vld [vmem:[#allocation4 + $0x28] sm:$0xff]
    %v37 = vld [vmem:[#allocation4 + $0x30] sm:$0xff]
    %v38 = vld [vmem:[#allocation4 + $0x38] sm:$0xff]
    %v39 = vld [vmem:[#allocation4 + $0x40] sm:$0xff]
    %v40 = vld [vmem:[#allocation4 + $0x48] sm:$0xff]
    %v41 = vld [vmem:[#allocation4 + $0x50] sm:$0xff]
    %v42 = vld [vmem:[#allocation4 + $0x58] sm:$0xff]
    %v43 = vld [vmem:[#allocation4 + $0x60] sm:$0xff]
    %v44 = vld [vmem:[#allocation4 + $0x68] sm:$0xff]
    %v45 = vld [vmem:[#allocation4 + $0x70] sm:$0xff]
    %v46 = vld [vmem:[#allocation4 + $0x78] sm:$0xff]
    %v47 = vld [vmem:[#allocation4 + $0x80] sm:$0xff]
    %v48 = vld [vmem:[#allocation4 + $0x88] sm:$0xff]
    %v49 = vld [vmem:[#allocation4 + $0x90] sm:$0xff]
    %v50 = vld [vmem:[#allocation4 + $0x98] sm:$0xff]
    %v51 = vld [vmem:[#allocation4 + $0xa0] sm:$0xff]
    %v52 = vld [vmem:[#allocation4 + $0xa8] sm:$0xff]
    %v53 = vld [vmem:[#allocation4 + $0xb0] sm:$0xff]
    %v54 = vld [vmem:[#allocation4 + $0xb8] sm:$0xff]
    %v55 = vld [vmem:[#allocation4 + $0xc0] sm:$0xff]
    %v56 = vld [vmem:[#allocation4 + $0xc8] sm:$0xff]
    %v57 = vld [vmem:[#allocation4 + $0xd0] sm:$0xff]
    %v58 = vld [vmem:[#allocation4 + $0xd8] sm:$0xff]
    %v59 = vld [vmem:[#allocation4 + $0xe0] sm:$0xff]
    %v60 = vld [vmem:[#allocation4 + $0xe8] sm:$0xff]
    %v61 = vld [vmem:[#allocation4 + $0xf0] sm:$0xff]
    %v62 = vld [vmem:[#allocation4 + $0xf8] sm:$0xff]
    %v63 = vld [vmem:[#allocation4 + $0x100] sm:$0xff]
    %v64 = vld [vmem:[#allocation4 + $0x108] sm:$0xff]
    %v65 = vld [vmem:[#allocation4 + $0x110] sm:$0xff]
    %v66 = vld [vmem:[#allocation4 + $0x118] sm:$0xff]
    %v67 = vld [vmem:[#allocation4 + $0x120] sm:$0xff]
    %v68 = vld [vmem:[#allocation4 + $0x128] sm:$0xff]
    %v69 = vld [vmem:[#allocation4 + $0x130] sm:$0xff]
    %v70 = vld [vmem:[#allocation4 + $0x138] sm:$0xff]
    %v71 = vld [vmem:[#allocation4 + $0x140] sm:$0xff]
    %v72 = vld [vmem:[#allocation4 + $0x148] sm:$0xff]
    %v73 = vld [vmem:[#allocation4 + $0x150] sm:$0xff]
    %v74 = vld [vmem:[#allocation4 + $0x158] sm:$0xff]
    %v75 = vld [vmem:[#allocation4 + $0x160] sm:$0xff]
    %v76 = vld [vmem:[#allocation4 + $0x168] sm:$0xff]
    %v77 = vld [vmem:[#allocation4 + $0x170] sm:$0xff]
    %v78 = vld [vmem:[#allocation4 + $0x178] sm:$0xff]
    %v79 = vld [vmem:[#allocation4 + $0x180] sm:$0xff]
    %v80 = vld [vmem:[#allocation4 + $0x188] sm:$0xff]
    %v81 = vld [vmem:[#allocation4 + $0x190] sm:$0xff]
    %v82 = vld [vmem:[#allocation4 + $0x198] sm:$0xff]
    %v83 = vld [vmem:[#allocation4 + $0x1a0] sm:$0xff]
    %v84 = vld [vmem:[#allocation4 + $0x1a8] sm:$0xff]
    %v85 = vld [vmem:[#allocation4 + $0x1b0] sm:$0xff]
    %v86 = vld [vmem:[#allocation4 + $0x1b8] sm:$0xff]
    %v87 = vld [vmem:[#allocation4 + $0x1c0] sm:$0xff]
    %v88 = vld [vmem:[#allocation4 + $0x1c8] sm:$0xff]
    %v89 = vld [vmem:[#allocation4 + $0x1d0] sm:$0xff]
    %v90 = vld [vmem:[#allocation4 + $0x1d8] sm:$0xff]
    %v91 = vld [vmem:[#allocation4 + $0x1e0] sm:$0xff]
    %v92 = vld [vmem:[#allocation4 + $0x1e8] sm:$0xff]
    %v93 = vld [vmem:[#allocation4 + $0x1f0] sm:$0xff]
    %v94 = vld [vmem:[#allocation4 + $0x1f8] sm:$0xff]
    %s95 = sld [smem:[#allocation2]]
    %s96 = sld [smem:[#allocation3]]
    %v97 = vstv %s95
    %v98 = vmul.f32 %v31, %v97
    %v99 = vmul.f32 %v32, %v97
    %v100 = vmul.f32 %v33, %v97
    %v101 = vmul.f32 %v34, %v97
    %v102 = vmul.f32 %v35, %v97
    %v103 = vmul.f32 %v36, %v97
    %v104 = vmul.f32 %v37, %v97
    %v105 = vmul.f32 %v38, %v97
    %v106 = vmul.f32 %v39, %v97
    %v107 = vmul.f32 %v40, %v97
    %v108 = vmul.f32 %v41, %v97
    %v109 = vmul.f32 %v42, %v97
    %v110 = vmul.f32 %v43, %v97
    %v111 = vmul.f32 %v44, %v97
    %v112 = vmul.f32 %v45, %v97
    %v113 = vmul.f32 %v46, %v97
    %v114 = vmul.f32 %v47, %v97
    %v115 = vmul.f32 %v48, %v97
    %v116 = vmul.f32 %v49, %v97
    %v117 = vmul.f32 %v50, %v97
    %v118 = vmul.f32 %v51, %v97
    %v119 = vmul.f32 %v52, %v97
    %v120 = vmul.f32 %v53, %v97
    %v121 = vmul.f32 %v54, %v97
    %v122 = vmul.f32 %v55, %v97
    %v123 = vmul.f32 %v56, %v97
    %v124 = vmul.f32 %v57, %v97
    %v125 = vmul.f32 %v58, %v97
    %v126 = vmul.f32 %v59, %v97
    %v127 = vmul.f32 %v60, %v97
    %v128 = vmul.f32 %v61, %v97
    %v129 = vmul.f32 %v62, %v97
    %v130 = vmul.f32 %v63, %v97
    %v131 = vmul.f32 %v64, %v97
    %v132 = vmul.f32 %v65, %v97
    %v133 = vmul.f32 %v66, %v97
    %v134 = vmul.f32 %v67, %v97
    %v135 = vmul.f32 %v68, %v97
    %v136 = vmul.f32 %v69, %v97
    %v137 = vmul.f32 %v70, %v97
    %v138 = vmul.f32 %v71, %v97
    %v139 = vmul.f32 %v72, %v97
    %v140 = vmul.f32 %v73, %v97
    %v141 = vmul.f32 %v74, %v97
    %v142 = vmul.f32 %v75, %v97
    %v143 = vmul.f32 %v76, %v97
    %v144 = vmul.f32 %v77, %v97
    %v145 = vmul.f32 %v78, %v97
    %v146 = vmul.f32 %v79, %v97
    %v147 = vmul.f32 %v80, %v97
    %v148 = vmul.f32 %v81, %v97
    %v149 = vmul.f32 %v82, %v97
    %v150 = vmul.f32 %v83, %v97
    %v151 = vmul.f32 %v84, %v97
    %v152 = vmul.f32 %v85, %v97
    %v153 = vmul.f32 %v86, %v97
    %v154 = vmul.f32 %v87, %v97
    %v155 = vmul.f32 %v88, %v97
    %v156 = vmul.f32 %v89, %v97
    %v157 = vmul.f32 %v90, %v97
    %v158 = vmul.f32 %v91, %v97
    %v159 = vmul.f32 %v92, %v97
    %v160 = vmul.f32 %v93, %v97
    %v161 = vmul.f32 %v94, %v97
    %v162 = vstv %s96
    %v163 = vadd.f32 %v98, %v162
    %v164 = vadd.f32 %v99, %v162
    %v165 = vadd.f32 %v100, %v162
    %v166 = vadd.f32 %v101, %v162
    %v167 = vadd.f32 %v102, %v162
    %v168 = vadd.f32 %v103, %v162
    %v169 = vadd.f32 %v104, %v162
    %v170 = vadd.f32 %v105, %v162
    %v171 = vadd.f32 %v106, %v162
    %v172 = vadd.f32 %v107, %v162
    %v173 = vadd.f32 %v108, %v162
    %v174 = vadd.f32 %v109, %v162
    %v175 = vadd.f32 %v110, %v162
    %v176 = vadd.f32 %v111, %v162
    %v177 = vadd.f32 %v112, %v162
    %v178 = vadd.f32 %v113, %v162
    %v179 = vadd.f32 %v114, %v162
    %v180 = vadd.f32 %v115, %v162
    %v181 = vadd.f32 %v116, %v162
    %v182 = vadd.f32 %v117, %v162
    %v183 = vadd.f32 %v118, %v162
    %v184 = vadd.f32 %v119, %v162
    %v185 = vadd.f32 %v120, %v162
    %v186 = vadd.f32 %v121, %v162
    %v187 = vadd.f32 %v122, %v162
    %v188 = vadd.f32 %v123, %v162
    %v189 = vadd.f32 %v124, %v162
    %v190 = vadd.f32 %v125, %v162
    %v191 = vadd.f32 %v126, %v162
    %v192 = vadd.f32 %v127, %v162
    %v193 = vadd.f32 %v128, %v162
    %v194 = vadd.f32 %v129, %v162
    %v195 = vadd.f32 %v130, %v162
    %v196 = vadd.f32 %v131, %v162
    %v197 = vadd.f32 %v132, %v162
    %v198 = vadd.f32 %v133, %v162
    %v199 = vadd.f32 %v134, %v162
    %v200 = vadd.f32 %v135, %v162
    %v201 = vadd.f32 %v136, %v162
    %v202 = vadd.f32 %v137, %v162
    %v203 = vadd.f32 %v138, %v162
    %v204 = vadd.f32 %v139, %v162
    %v205 = vadd.f32 %v140, %v162
    %v206 = vadd.f32 %v141, %v162
    %v207 = vadd.f32 %v142, %v162
    %v208 = vadd.f32 %v143, %v162
    %v209 = vadd.f32 %v144, %v162
    %v210 = vadd.f32 %v145, %v162
    %v211 = vadd.f32 %v146, %v162
    %v212 = vadd.f32 %v147, %v162
    %v213 = vadd.f32 %v148, %v162
    %v214 = vadd.f32 %v149, %v162
    %v215 = vadd.f32 %v150, %v162
    %v216 = vadd.f32 %v151, %v162
    %v217 = vadd.f32 %v152, %v162
    %v218 = vadd.f32 %v153, %v162
    %v219 = vadd.f32 %v154, %v162
    %v220 = vadd.f32 %v155, %v162
    %v221 = vadd.f32 %v156, %v162
    %v222 = vadd.f32 %v157, %v162
    %v223 = vadd.f32 %v158, %v162
    %v224 = vadd.f32 %v159, %v162
    %v225 = vadd.f32 %v160, %v162
    %v226 = vadd.f32 %v161, %v162
    %227 = vst [vmem:[#allocation7] sm:$0xff] %v163
    %228 = vst [vmem:[#allocation7 + $0x8] sm:$0xff] %v164
    %229 = vst [vmem:[#allocation7 + $0x10] sm:$0xff] %v165
    %230 = vst [vmem:[#allocation7 + $0x18] sm:$0xff] %v166
    %231 = vst [vmem:[#allocation7 + $0x20] sm:$0xff] %v167
    %232 = vst [vmem:[#allocation7 + $0x28] sm:$0xff] %v168
    %233 = vst [vmem:[#allocation7 + $0x30] sm:$0xff] %v169
    %234 = vst [vmem:[#allocation7 + $0x38] sm:$0xff] %v170
    %235 = vst [vmem:[#allocation7 + $0x40] sm:$0xff] %v171
    %236 = vst [vmem:[#allocation7 + $0x48] sm:$0xff] %v172
    %237 = vst [vmem:[#allocation7 + $0x50] sm:$0xff] %v173
    %238 = vst [vmem:[#allocation7 + $0x58] sm:$0xff] %v174
    %239 = vst [vmem:[#allocation7 + $0x60] sm:$0xff] %v175
    %240 = vst [vmem:[#allocation7 + $0x68] sm:$0xff] %v176
    %241 = vst [vmem:[#allocation7 + $0x70] sm:$0xff] %v177
    %242 = vst [vmem:[#allocation7 + $0x78] sm:$0xff] %v178
    %243 = vst [vmem:[#allocation7 + $0x80] sm:$0xff] %v179
    %244 = vst [vmem:[#allocation7 + $0x88] sm:$0xff] %v180
    %245 = vst [vmem:[#allocation7 + $0x90] sm:$0xff] %v181
    %246 = vst [vmem:[#allocation7 + $0x98] sm:$0xff] %v182
    %247 = vst [vmem:[#allocation7 + $0xa0] sm:$0xff] %v183
    %248 = vst [vmem:[#allocation7 + $0xa8] sm:$0xff] %v184
    %249 = vst [vmem:[#allocation7 + $0xb0] sm:$0xff] %v185
    %250 = vst [vmem:[#allocation7 + $0xb8] sm:$0xff] %v186
    %251 = vst [vmem:[#allocation7 + $0xc0] sm:$0xff] %v187
    %252 = vst [vmem:[#allocation7 + $0xc8] sm:$0xff] %v188
    %253 = vst [vmem:[#allocation7 + $0xd0] sm:$0xff] %v189
    %254 = vst [vmem:[#allocation7 + $0xd8] sm:$0xff] %v190
    %255 = vst [vmem:[#allocation7 + $0xe0] sm:$0xff] %v191
    %256 = vst [vmem:[#allocation7 + $0xe8] sm:$0xff] %v192
    %257 = vst [vmem:[#allocation7 + $0xf0] sm:$0xff] %v193
    %258 = vst [vmem:[#allocation7 + $0xf8] sm:$0xff] %v194
    %259 = vst [vmem:[#allocation7 + $0x100] sm:$0xff] %v195
    %260 = vst [vmem:[#allocation7 + $0x108] sm:$0xff] %v196
    %261 = vst [vmem:[#allocation7 + $0x110] sm:$0xff] %v197
    %262 = vst [vmem:[#allocation7 + $0x118] sm:$0xff] %v198
    %263 = vst [vmem:[#allocation7 + $0x120] sm:$0xff] %v199
    %264 = vst [vmem:[#allocation7 + $0x128] sm:$0xff] %v200
    %265 = vst [vmem:[#allocation7 + $0x130] sm:$0xff] %v201
    %266 = vst [vmem:[#allocation7 + $0x138] sm:$0xff] %v202
    %267 = vst [vmem:[#allocation7 + $0x140] sm:$0xff] %v203
    %268 = vst [vmem:[#allocation7 + $0x148] sm:$0xff] %v204
    %269 = vst [vmem:[#allocation7 + $0x150] sm:$0xff] %v205
    %270 = vst [vmem:[#allocation7 + $0x158] sm:$0xff] %v206
    %271 = vst [vmem:[#allocation7 + $0x160] sm:$0xff] %v207
    %272 = vst [vmem:[#allocation7 + $0x168] sm:$0xff] %v208
    %273 = vst [vmem:[#allocation7 + $0x170] sm:$0xff] %v209
    %274 = vst [vmem:[#allocation7 + $0x178] sm:$0xff] %v210
    %275 = vst [vmem:[#allocation7 + $0x180] sm:$0xff] %v211
    %276 = vst [vmem:[#allocation7 + $0x188] sm:$0xff] %v212
    %277 = vst [vmem:[#allocation7 + $0x190] sm:$0xff] %v213
    %278 = vst [vmem:[#allocation7 + $0x198] sm:$0xff] %v214
    %279 = vst [vmem:[#allocation7 + $0x1a0] sm:$0xff] %v215
    %280 = vst [vmem:[#allocation7 + $0x1a8] sm:$0xff] %v216
    %281 = vst [vmem:[#allocation7 + $0x1b0] sm:$0xff] %v217
    %282 = vst [vmem:[#allocation7 + $0x1b8] sm:$0xff] %v218
    %283 = vst [vmem:[#allocation7 + $0x1c0] sm:$0xff] %v219
    %284 = vst [vmem:[#allocation7 + $0x1c8] sm:$0xff] %v220
    %285 = vst [vmem:[#allocation7 + $0x1d0] sm:$0xff] %v221
    %286 = vst [vmem:[#allocation7 + $0x1d8] sm:$0xff] %v222
    %287 = vst [vmem:[#allocation7 + $0x1e0] sm:$0xff] %v223
    %288 = vst [vmem:[#allocation7 + $0x1e8] sm:$0xff] %v224
    %289 = vst [vmem:[#allocation7 + $0x1f0] sm:$0xff] %v225
    %290 = vst [vmem:[#allocation7 + $0x1f8] sm:$0xff] %v226
    // Predicated region
    $region18: #{tpu_custom_call.1} parent=1 // pred_check
      _
    $region19: #{tpu_custom_call.1} parent=1 // pred_check_branch
      %292 = sbr.rel (0) target = $region21
    $region20: #{tpu_custom_call.1} parent=1 // pred_region
      %s294 = ssub.s32 8192, 8192
      %295 = vsyncadd [#allocation6], %s294
      %s296 = sshll.u32 [#allocation7], 4
      %s297 = int_to_ptr.vmem [resolvable:$true] %s296
      %302 = dma.vmem_to_hbm [thread:$0]  %s297, 8192, %s3, [#allocation6], 512, 512, 32
    $region21: #{tpu_custom_call.1} parent=1 // pred_fallthru
      _
    // Predicated region
    $region22: #{tpu_custom_call.1} parent=1 // pred_check
      _
    $region23: #{tpu_custom_call.1} parent=1 // pred_check_branch
      %304 = sbr.rel (0) target = $region25
    $region24: #{tpu_custom_call.1} parent=1 // pred_region
      %305 = dma.done [#allocation6], 8192
    $region25: #{tpu_custom_call.1} parent=1 // pred_fallthru
      _
    %306 = vsyncpa [#allocation5], 1
    %307 = vsyncpa [#allocation6], 1

</llo_original>
